<compile_context>
chip_gen: v7x
topology: tpu7x:2x2x1
jax: 0.10.0
libtpu: 0.0.40
codegen_flags: <defaults>
</compile_context>

<pallas_src>
import numpy as np
import jax
import jax.numpy as jnp
from jax.experimental import pallas as pl
from jax.experimental.pallas import tpu as pltpu


# ----------------------------- small helpers --------------------------------
def _round_up(x, m):
    return -(-x // m) * m


def _pick_row_tile(M, tm):
    """Full batch if it fits in one tile, else a sublane-aligned (multiple-of-8) tile."""
    tm = max(8, _round_up(tm, 8))
    return M if M <= tm else tm


def _compiler_params(vmem_need_bytes):
    limit = int(min(128 * 1024 * 1024, max(2 * vmem_need_bytes, 32 * 1024 * 1024)))
    return pltpu.CompilerParams(dimension_semantics=("parallel",),
                                vmem_limit_bytes=limit)


# --------------------- path A: fused block-diagonal (d_model < 128) ---------
def _blockdiag_kernel(x_ref, w_ref, b_ref, o_ref):
    # MXU matmul (bf16 in, f32 accumulate), f32 bias add (VPU) + tanh (EUP).
    acc = jnp.dot(x_ref[...], w_ref[...], preferred_element_type=jnp.float32)
    o_ref[...] = jnp.tanh(acc + b_ref[...])


def blockdiag_linear_tanh(x, w_bd, b_cat, *, tm=512):
    """tanh(x @ w_bd + b_cat): x (M,k) bf16, w_bd (k,n) bf16, b (1,n) f32 -> (M,n) f32."""
    M, k_in = x.shape
    n_out = w_bd.shape[1]
    TM = _pick_row_tile(M, tm)
    grid = (pl.cdiv(M, TM),)

    vmem_need = (2 * TM * k_in * x.dtype.itemsize            # pipelined x blocks
                 + 2 * TM * n_out * 4                        # pipelined out blocks
                 + 2 * (k_in * n_out * w_bd.dtype.itemsize + n_out * 4))
    cost = pl.CostEstimate(
        flops=2 * M * k_in * n_out,
        transcendentals=M * n_out,
        bytes_accessed=(M * k_in * x.dtype.itemsize
                        + k_in * n_out * w_bd.dtype.itemsize
                        + n_out * 4 + M * n_out * 4))
    return pl.pallas_call(
        _blockdiag_kernel,
        out_shape=jax.ShapeDtypeStruct((M, n_out), jnp.float32),
        grid=grid,
        in_specs=[
            pl.BlockSpec((TM, k_in), lambda i: (i, 0)),
            pl.BlockSpec((k_in, n_out), lambda i: (0, 0)),   # constant index: copied once
            pl.BlockSpec((1, n_out), lambda i: (0, 0)),
        ],
        out_specs=pl.BlockSpec((TM, n_out), lambda i: (i, 0)),
        compiler_params=_compiler_params(vmem_need),
        cost_estimate=cost,
    )(x, w_bd, b_cat)


# --------------------- path B: grouped exact matmuls (d_model >= 128) -------
def _make_grouped_kernel(split_shape, d_model):
    """One exact (TM, L_i) @ (L_i, d_model) matmul per sub-slot; all offsets static."""
    def kernel(x_ref, *refs):
        o_ref = refs[-1]
        col = 0
        off = 0
        for gi, (K, L) in enumerate(split_shape):
            w = refs[2 * gi][...]        # (L, d_model) bf16 — read once per group
            b = refs[2 * gi + 1][...]    # (1, d_model) f32
            for j in range(K):
                xs = x_ref[:, off + j * L: off + (j + 1) * L]           # (TM, L) static
                acc = jnp.dot(xs, w, preferred_element_type=jnp.float32)
                o_ref[:, col: col + d_model] = jnp.tanh(acc + b)        # lane-dense store
                col += d_model
            off += K * L
    return kernel


def grouped_linear_tanh(x, group_w, group_b, split_shape, d_model, *, tm=512):
    M, k_in = x.shape
    total_k = sum(k for k, _ in split_shape)
    n_out = total_k * d_model
    TM = _pick_row_tile(M, tm)
    grid = (pl.cdiv(M, TM),)

    in_specs = [pl.BlockSpec((TM, k_in), lambda i: (i, 0))]
    operands = [x]
    w_bytes = 0
    for (K, L), w, b in zip(split_shape, group_w, group_b):
        in_specs.append(pl.BlockSpec((L, d_model), lambda i: (0, 0)))    # tiny resident W
        in_specs.append(pl.BlockSpec((1, d_model), lambda i: (0, 0)))    # tiny resident b
        operands += [w, b]
        w_bytes += L * d_model * w.dtype.itemsize + d_model * 4

    vmem_need = 2 * TM * k_in * x.dtype.itemsize + 2 * TM * n_out * 4 + 2 * w_bytes
    cost = pl.CostEstimate(
        flops=2 * M * sum(K * L * d_model for K, L in split_shape),      # true FLOPs
        transcendentals=M * n_out,
        bytes_accessed=M * k_in * x.dtype.itemsize + w_bytes + M * n_out * 4)
    return pl.pallas_call(
        _make_grouped_kernel(tuple(split_shape), d_model),
        out_shape=jax.ShapeDtypeStruct((M, n_out), jnp.float32),
        grid=grid,
        in_specs=in_specs,
        out_specs=pl.BlockSpec((TM, n_out), lambda i: (i, 0)),
        compiler_params=_compiler_params(vmem_need),
        cost_estimate=cost,
    )(*operands)


# -------------------------- parameter initialization ------------------------
def _orthogonal(key, rows, cols, gain):
    """Orthogonal init matching torch.nn.init.orthogonal_ semantics."""
    n, m = max(rows, cols), min(rows, cols)
    a = np.asarray(jax.random.normal(key, (n, m), dtype=jnp.float32), dtype=np.float64)
    q, r = np.linalg.qr(a)
    q = q * np.sign(np.diag(r))[None, :]
    if rows < cols:
        q = q.T
    return (gain * q[:rows, :cols]).astype(np.float32)


def init_embedding(key, split_shape, d_model):
    """Master f32 params per group + kernel-layout copies (bf16 W, d_model on lanes)."""
    split_shape = tuple((int(k), int(l)) for k, l in split_shape)
    gain = float(np.sqrt(2.0))
    groups = []
    for (_K, L) in split_shape:
        key, sub = jax.random.split(key)
        w = _orthogonal(sub, d_model, L, gain).T         # (L, d_model), transposed ONCE
        b = np.zeros((1, d_model), dtype=np.float32)     # nn.init.constant_(0)
        groups.append((w, b))

    mod = {
        "split_shape": split_shape,
        "d_model": d_model,
        "groups_f32": [(jnp.asarray(w), jnp.asarray(b)) for w, b in groups],
        "group_w_bf16": [jnp.asarray(w, dtype=jnp.bfloat16) for w, _ in groups],
        "group_b": [jnp.asarray(b) for _, b in groups],
    }
    if d_model < 128:
        # Small-d_model path only: block-diagonal fusion for one lane-dense store.
        obs_dim = sum(k * l for k, l in split_shape)
        total_k = sum(k for k, _ in split_shape)
        w_bd = np.zeros((obs_dim, total_k * d_model), dtype=np.float32)
        b_cat = np.zeros((1, total_k * d_model), dtype=np.float32)
        off, slot = 0, 0
        for (K, L), (w, b) in zip(split_shape, groups):
            for j in range(K):
                r0, c0 = off + j * L, (slot + j) * d_model
                w_bd[r0:r0 + L, c0:c0 + d_model] = w
                b_cat[0, c0:c0 + d_model] = b[0]
            off += K * L
            slot += K
        mod["w_bd_bf16"] = jnp.asarray(w_bd, dtype=jnp.bfloat16)
        mod["b_cat"] = jnp.asarray(b_cat)
    return mod


# ------------------------------ forward pass ---------------------------------
def embedding_forward(x, mod, self_idx, *, tm=512):
    """Pallas-backed equivalent of Embedding.forward -> (out (B,totalK,d_model), self_x)."""
    split_shape, d_model = mod["split_shape"], mod["d_model"]
    B = x.shape[0]
    total_k = sum(k for k, _ in split_shape)
    off = sum(k * l for k, l in split_shape[:self_idx])
    K_s, L_s = split_shape[self_idx]
    self_x = x[:, off: off + K_s * L_s]              # raw f32 slice, like torch

    # bf16 inputs halve HBM read traffic; f32 accumulate + epilogue stay in-kernel.
    # TODO(synk): in a full model, let XLA fuse this cast into the producer of x.
    x_bf16 = x.astype(jnp.bfloat16)

    if d_model >= 128:
        y = grouped_linear_tanh(x_bf16, mod["group_w_bf16"], mod["group_b"],
                                split_shape, d_model, tm=tm)
    else:
        y = blockdiag_linear_tanh(x_bf16, mod["w_bd_bf16"], mod["b_cat"], tm=tm)
    out = y.reshape(B, total_k, d_model)             # matches torch.stack(dim=1) ordering
    return out, self_x


# ------------------------------ reference (numpy) -----------------------------
def _bf16_round(a):
    return np.asarray(jnp.asarray(a).astype(jnp.bfloat16).astype(jnp.float32))


def reference_forward(x, mod, self_idx):
    split_shape = mod["split_shape"]
    xq = _bf16_round(x)
    rows, off = [], 0
    for (K, L), (w, b) in zip(split_shape, mod["groups_f32"]):
        wq = _bf16_round(w)
        bq = np.asarray(b, dtype=np.float32)
        for j in range(K):
            t = xq[:, off + j * L: off + (j + 1) * L]
            rows.append(np.tanh(t @ wq + bq[0]))
        off += K * L
    out = np.stack(rows, axis=1)
    off_s = sum(k * l for k, l in split_shape[:self_idx])
    K_s, L_s = split_shape[self_idx]
    self_x = np.asarray(x)[:, off_s: off_s + K_s * L_s]
    return out, self_x


# ---------------------------------- main --------------------------------------
if __name__ == "__main__":
    def run_case(split_shape, d_model, batch, self_idx, tm):
        key = jax.random.PRNGKey(0)
        pkey, xkey = jax.random.split(key)
        mod = init_embedding(pkey, split_shape, d_model)
        obs_dim = sum(k * l for k, l in split_shape)
        x = jax.random.normal(xkey, (batch, obs_dim), dtype=jnp.float32)

        out, self_x = embedding_forward(x, mod, self_idx, tm=tm)
        out = jax.block_until_ready(out)
        self_x = jax.block_until_ready(self_x)

        total_k = sum(k for k, _ in split_shape)
        assert out.shape == (batch, total_k, d_model)
        assert self_x.shape == (batch, split_shape[self_idx][0] * split_shape[self_idx][1])

        ref_out, ref_self = reference_forward(x, mod, self_idx)
        np.testing.assert_allclose(np.asarray(out), ref_out, rtol=2e-3, atol=1e-4)
        np.testing.assert_array_equal(np.asarray(self_x), ref_self)

    # Case 1: small d_model (<128) -> fused block-diagonal path (toy config).
    run_case([(2, 8), (3, 16)], d_model=32, batch=2, self_idx=0, tm=512)
    # Case 2: production-style d_model (>=128) -> grouped path; batch/tile chosen so
    # the "parallel" row grid has several steps plus a ragged last block (no pad).
    run_case([(2, 8), (3, 16)], d_model=128, batch=300, self_idx=1, tm=128)

    print("KERNEL_OK")
</pallas_src>

<mosaic_0001>
module attributes {stable_mosaic.version = 11 : i64} {
  func.func @_blockdiag_kernel(%arg0: i32, %arg1: memref<2x64xbf16, #tpu.memory_space<vmem>>, %arg2: memref<64x160xbf16, #tpu.memory_space<vmem>>, %arg3: memref<1x160xf32, #tpu.memory_space<vmem>>, %arg4: memref<2x160xf32, #tpu.memory_space<vmem>>) attributes {dimension_semantics = [#tpu.dimension_semantics<parallel>], iteration_bounds = array<i64: 1>, scalar_prefetch = 0 : i64, scratch_operands = 0 : i64, tpu.core_type = #tpu.core_type<tc>, window_params = [{transform_indices = @transform_0, window_bounds = array<i64: 2, 64>}, {pipeline_mode = #tpu.pipeline_mode<synchronous>, transform_indices = @transform_1, window_bounds = array<i64: 64, 160>}, {pipeline_mode = #tpu.pipeline_mode<synchronous>, transform_indices = @transform_2, window_bounds = array<i64: 1, 160>}, {transform_indices = @transform_3, window_bounds = array<i64: 2, 160>}]} {
    %c0 = arith.constant 0 : index
    %c0_0 = arith.constant 0 : index
    %0 = vector.load %arg1[%c0, %c0_0] : memref<2x64xbf16, #tpu.memory_space<vmem>>, vector<2x64xbf16>
    %c0_1 = arith.constant 0 : index
    %c0_2 = arith.constant 0 : index
    %1 = vector.load %arg2[%c0_1, %c0_2] : memref<64x160xbf16, #tpu.memory_space<vmem>>, vector<64x160xbf16>
    %cst = arith.constant dense<0.000000e+00> : vector<2x160xf32>
    %2 = tpu.matmul %0, %1, %cst {dimension_numbers = #tpu.dot_dimension_numbers<[1], [0], [0], [1], [0, 0, 1, 1], [], []>} : vector<2x64xbf16>, vector<64x160xbf16>, vector<2x160xf32> -> vector<2x160xf32>
    %c0_3 = arith.constant 0 : index
    %c0_4 = arith.constant 0 : index
    %3 = vector.load %arg3[%c0_3, %c0_4] : memref<1x160xf32, #tpu.memory_space<vmem>>, vector<1x160xf32>
    %4 = vector.broadcast %3 : vector<1x160xf32> to vector<2x160xf32>
    %5 = arith.addf %2, %4 : vector<2x160xf32>
    %6 = math.tanh %5 : vector<2x160xf32>
    %c0_5 = arith.constant 0 : index
    %c0_6 = arith.constant 0 : index
    %7 = vector.load %arg4[%c0_5, %c0_6] : memref<2x160xf32, #tpu.memory_space<vmem>>, vector<2x160xf32>
    tpu.vector_store %arg4[%c0_5, %c0_6], %6 {strides = array<i32>} : memref<2x160xf32, #tpu.memory_space<vmem>>, vector<2x160xf32>,
    return
  }
  func.func @transform_0(%arg0: i32) -> (i32, i32) {
    %c0_i32 = arith.constant 0 : i32
    %c0_i32_0 = arith.constant 0 : i32
    return %arg0, %c0_i32 : i32, i32
  }
  func.func @transform_1(%arg0: i32) -> (i32, i32) {
    %c0_i32 = arith.constant 0 : i32
    %c0_i32_0 = arith.constant 0 : i32
    %c0_i32_1 = arith.constant 0 : i32
    return %c0_i32, %c0_i32_0 : i32, i32
  }
  func.func @transform_2(%arg0: i32) -> (i32, i32) {
    %c0_i32 = arith.constant 0 : i32
    %c0_i32_0 = arith.constant 0 : i32
    %c0_i32_1 = arith.constant 0 : i32
    return %c0_i32, %c0_i32_0 : i32, i32
  }
  func.func @transform_3(%arg0: i32) -> (i32, i32) {
    %c0_i32 = arith.constant 0 : i32
    %c0_i32_0 = arith.constant 0 : i32
    return %arg0, %c0_i32 : i32, i32
  }
}

</mosaic_0001>

<llo_original>
// kernel: tpu_custom_call.1
$region0: #{tpu_custom_call.1}
  #allocation0 [shape = 'u32[]', space=smem, size = 0x4, offset = 0x4, fixed_abs, tag = 'smem constant byte address 0x4 - core index']
  #allocation1 [shape = 'u32[144,128]{1,0:T(1,128)}', space=vmem, size = 0x12000, scoped, tag = 'internal scratch']
  %s0 = inlined_call_operand.hbm [shape: bf16[2,64], index: 0, kind: input, shape index: {}]
  %s1 = inlined_call_operand.hbm [shape: bf16[64,160], index: 1, kind: input, shape index: {}]
  %s2 = inlined_call_operand.vmem [shape: f32[1,160], index: 2, kind: input, shape index: {}]
  %s3 = inlined_call_operand.hbm [shape: f32[2,160], index: 3, kind: output, shape index: {}]
  %s4 = sld [smem:[#allocation0]]
  $region30: #{tpu_custom_call.1} parent=0
    _
  %s6 = ssub.s32 1, %s4
  %s7 = scalar_select 0, %s6, %s4
  $region1: #{tpu_custom_call.1} parent=0
    #allocation2 [shape = 'u8[512]{0}', space=vmem, size = 0x400, scoped, tag = 'input window, operand 0, single buffered']
    #allocation3 [shape = 's32[1]{0}', space=sflag, size = 0x4, scoped, tag = 'scoped memory for tpu_custom_call.1']
    #allocation4 [shape = 's32[1]{0}', space=sflag, size = 0x4, scoped, tag = 'scoped memory for tpu_custom_call.1']
    #allocation5 [shape = 'u8[32768]{0}', space=vmem, size = 0x8000, scoped, tag = 'input window, operand 1, single buffered']
    #allocation6 [shape = 's32[1]{0}', space=sflag, size = 0x4, scoped, tag = 'scoped memory for tpu_custom_call.1']
    #allocation7 [shape = 'u8[2048]{0}', space=vmem, size = 0x800, scoped, tag = 'output window, operand 0, single buffered']
    %8 = vsyncpa [#allocation3], 0
    %9 = vsyncpa [#allocation6], 0
    %10 = vsyncpa [#allocation4], 0
    // Predicated region
    $region2: #{tpu_custom_call.1} parent=1 // pred_check
      _
    $region3: #{tpu_custom_call.1} parent=1 // pred_check_branch
      %12 = sbr.rel (0) target = $region5
    $region4: #{tpu_custom_call.1} parent=1 // pred_region
      %s14 = ssub.s32 16, 16
      %15 = vsyncadd [#allocation3], %s14
      %s17 = sshll.u32 [#allocation2], 4
      %s18 = int_to_ptr.vmem [resolvable:$true] %s17
      %20 = dma.hbm_to_vmem [thread:$0]  %s0, 16, %s18, [#allocation3]
    $region5: #{tpu_custom_call.1} parent=1 // pred_fallthru
      _
    // Predicated region
    $region6: #{tpu_custom_call.1} parent=1 // pred_check
      _
    $region7: #{tpu_custom_call.1} parent=1 // pred_check_branch
      %22 = sbr.rel (0) target = $region9
    $region8: #{tpu_custom_call.1} parent=1 // pred_region
      %s24 = ssub.s32 1024, 1024
      %25 = vsyncadd [#allocation6], %s24
      %s26 = sshll.u32 [#allocation5], 4
      %s27 = int_to_ptr.vmem [resolvable:$true] %s26
      %32 = dma.hbm_to_vmem [thread:$0]  %s1, 1024, %s27, [#allocation6], 128, 128, 8
    $region9: #{tpu_custom_call.1} parent=1 // pred_fallthru
      _
    // Predicated region
    $region10: #{tpu_custom_call.1} parent=1 // pred_check
      _
    $region11: #{tpu_custom_call.1} parent=1 // pred_check_branch
      %34 = sbr.rel (0) target = $region13
    $region12: #{tpu_custom_call.1} parent=1 // pred_region
      _
    $region13: #{tpu_custom_call.1} parent=1 // pred_fallthru
      _
    // Predicated region
    $region14: #{tpu_custom_call.1} parent=1 // pred_check
      _
    $region15: #{tpu_custom_call.1} parent=1 // pred_check_branch
      %36 = sbr.rel (0) target = $region17
    $region16: #{tpu_custom_call.1} parent=1 // pred_region
      %37 = dma.done [#allocation3], 16
    $region17: #{tpu_custom_call.1} parent=1 // pred_fallthru
      _
    // Predicated region
    $region18: #{tpu_custom_call.1} parent=1 // pred_check
      _
    $region19: #{tpu_custom_call.1} parent=1 // pred_check_branch
      %39 = sbr.rel (0) target = $region21
    $region20: #{tpu_custom_call.1} parent=1 // pred_region
      %40 = dma.done [#allocation6], 1024
    $region21: #{tpu_custom_call.1} parent=1 // pred_fallthru
      _
    %v42 = vld [vmem:[#allocation2] sm:$0x1]
    %v43 = vld [vmem:[#allocation5] sm:$0xff]
    %v44 = vld [vmem:[#allocation5 + $0x8] sm:$0xff]
    %v45 = vld [vmem:[#allocation5 + $0x10] sm:$0xff]
    %v46 = vld [vmem:[#allocation5 + $0x18] sm:$0xff]
    %v47 = vld [vmem:[#allocation5 + $0x20] sm:$0xff]
    %v48 = vld [vmem:[#allocation5 + $0x28] sm:$0xff]
    %v49 = vld [vmem:[#allocation5 + $0x30] sm:$0xff]
    %v50 = vld [vmem:[#allocation5 + $0x38] sm:$0xff]
    %v51 = vld [vmem:[%s2] sm:$0x3]
    %v53 = vlaneseq
    %v54 = vshrl.u32 %v53, 7
    %v55 = vsub.s32 0, %v54
    %v56 = vrot.slane %v51, %v55
    %v57 = vlaneseq
    %v58 = vshrl.u32 %v57, 7
    %v59 = vsub.s32 1, %v58
    %v60 = vrot.slane %v51, %v59
    %v71 = vunpack.c.l.b16 %v43
    %v72 = vunpack.c.h.b16 %v43
    %v73 = vunpack.c.l.b16 %v44
    %v74 = vunpack.c.h.b16 %v44
    %v75 = vunpack.c.l.b16 %v45
    %v76 = vunpack.c.h.b16 %v45
    %v77 = vunpack.c.l.b16 %v46
    %v78 = vunpack.c.h.b16 %v46
    %v79 = vunpack.c.l.b16 %v47
    %v80 = vunpack.c.h.b16 %v47
    %v81 = vunpack.c.l.b16 %v48
    %v82 = vunpack.c.h.b16 %v48
    %v83 = vunpack.c.l.b16 %v49
    %v84 = vunpack.c.h.b16 %v49
    %v85 = vunpack.c.l.b16 %v50
    %v86 = vunpack.c.h.b16 %v50
    %v87 = vpack.c.b16 %v73, %v71
    %v88 = vpack.c.b16 %v74, %v72
    %v89 = vpack.c.b16 %v77, %v75
    %v90 = vpack.c.b16 %v78, %v76
    %v91 = vpack.c.b16 %v81, %v79
    %v92 = vpack.c.b16 %v82, %v80
    %v93 = vpack.c.b16 %v85, %v83
    %v94 = vpack.c.b16 %v86, %v84
    %vm103 = vcmask 523264
    %v105 = vsel %vm103, %v42, 0
    %107 = vmatprep.subr.bf16.mxu0 %v88
    %108 = vmatpush1.bf16.msra.mxu0 %v87
    %109 = vmatprep.subr.bf16.mxu0 %v90
    %110 = vmatpush1.bf16.msra.mxu0 %v89
    %111 = vmatprep.subr.bf16.mxu0 %v92
    %112 = vmatpush1.bf16.msra.mxu0 %v91
    %113 = vmatprep.subr.bf16.mxu0 %v94
    %114 = vmatpush1.bf16.msra.mxu0 %v93
    %115 = vmatprep.subr.bf16.mxu0 0
    %116 = vmatpush1.bf16.msra.mxu0 0
    %117 = vmatprep.subr.bf16.mxu0 0
    %118 = vmatpush1.bf16.msra.mxu0 0
    %119 = vmatprep.subr.bf16.mxu0 0
    %120 = vmatpush1.bf16.msra.mxu0 0
    %121 = vmatprep.subr.bf16.mxu0 0
    %122 = vmatpush1.bf16.msra.mxu0 0
    %123 = vmatprep.subr.bf16.mxu0 0
    %124 = vmatpush1.bf16.msra.mxu0 0
    %125 = vmatprep.subr.bf16.mxu0 0
    %126 = vmatpush1.bf16.msra.mxu0 0
    %127 = vmatprep.subr.bf16.mxu0 0
    %128 = vmatpush1.bf16.msra.mxu0 0
    %129 = vmatprep.subr.bf16.mxu0 0
    %130 = vmatpush1.bf16.msra.mxu0 0
    %131 = vmatprep.subr.bf16.mxu0 0
    %132 = vmatpush1.bf16.msra.mxu0 0
    %133 = vmatprep.subr.bf16.mxu0 0
    %134 = vmatpush1.bf16.msra.mxu0 0
    %135 = vmatprep.subr.bf16.mxu0 0
    %136 = vmatpush1.bf16.msra.mxu0 0
    %137 = vmatprep.subr.bf16.mxu0 0
    %138 = vmatpush1.bf16.msra.mxu0 0
    %139 = vmatprep.mubr.bf16.mxu0 0
    %140 = vmatmul.mubr.bf16.gmra.mrb[0].mxu0 %v105
    %v141 = vpop.f32.mrb[0].mxu0
    %v142 = vadd.f32 %v56, %v141
    %v143 = vpop.f32.mrb[0].mxu0
    %v144 = vadd.f32 %v60, %v143
    %v145 = vpop.f32.mrb[0].mxu0
    %v146 = vpop.f32.mrb[0].mxu0
    %147 = vdwg.mxu0
    %v148 = vtanh.pop %v142
    %v149 = vtanh.pop %v144
    %v152 = vcombine.low %v148, %v149
    %v154 = vunpack.c.l.s4 1983009808
    %v155 = vunpack.c.0.s8 %v154
    %v156 = vlaneseq
    %v157 = vshrl.u32 %v156, 7
    %v158 = vsub.s32 %v155, %v157
    %v159 = vrot.slane %v152, %v158
    %vm161 = vcmask 1041408
    %vm162 = vcmask 257026
    %vm163 = vmor %vm162, %vm161
    %164 = vst.msk [vmem:[#allocation7] sm:$0xf] %vm163, %v159
    // Predicated region
    $region22: #{tpu_custom_call.1} parent=1 // pred_check
      _
    $region23: #{tpu_custom_call.1} parent=1 // pred_check_branch
      %166 = sbr.rel (0) target = $region25
    $region24: #{tpu_custom_call.1} parent=1 // pred_region
      %s168 = ssub.s32 64, 64
      %169 = vsyncadd [#allocation4], %s168
      %s171 = sshll.u32 [#allocation7], 4
      %s172 = int_to_ptr.vmem [resolvable:$true] %s171
      %174 = dma.vmem_to_hbm [thread:$0]  %s172, 64, %s3, [#allocation4]
    $region25: #{tpu_custom_call.1} parent=1 // pred_fallthru
      _
    // Predicated region
    $region26: #{tpu_custom_call.1} parent=1 // pred_check
      _
    $region27: #{tpu_custom_call.1} parent=1 // pred_check_branch
      %176 = sbr.rel (0) target = $region29
    $region28: #{tpu_custom_call.1} parent=1 // pred_region
      %177 = dma.done [#allocation4], 64
    $region29: #{tpu_custom_call.1} parent=1 // pred_fallthru
      _
    %178 = vsyncpa [#allocation3], 1
    %179 = vsyncpa [#allocation6], 1
    %180 = vsyncpa [#allocation4], 1

</llo_original>
